<compile_context>
chip_gen: v7x
topology: tpu7x:2x2x1
jax: 0.10.0
libtpu: 0.0.40
codegen_flags: <defaults>
</compile_context>

<pallas_src>
import functools
import math

import jax
import jax.numpy as jnp
from jax.experimental import pallas as pl
from jax.experimental.pallas import tpu as pltpu


# ----------------------------------------------------------------------------
# Parameter construction (deterministic, mirrors FittingNet.__init__ shapes)
# ----------------------------------------------------------------------------
def init_fitting_net_params(key, network_size, input_dim, *, bias_flag=True,
                            resnet_dt_flag=True, ener_shift=0.0, last_bias=True):
    """Returns (layers, full_sizes); layers is a list of dicts with keys
    'w' and optionally 'b', 'rdt', matching LayerModule parameters."""
    full = [input_dim] + list(network_size)
    layers = []
    # hidden layers: i = 1 .. len(full)-2
    for i in range(1, len(full) - 1):
        key, kw, kb, kr = jax.random.split(key, 4)
        std_w = 1.0 / math.sqrt(full[i - 1] + full[i])
        layer = {"w": jax.random.normal(kw, (full[i - 1], full[i]), jnp.float32) * std_w}
        if bias_flag:
            layer["b"] = jax.random.normal(kb, (1, full[i]), jnp.float32)
        if i > 1 and resnet_dt_flag:
            layer["rdt"] = 0.1 + 0.001 * jax.random.normal(kr, (1, full[i]), jnp.float32)
        layers.append(layer)
    # last layer
    i = len(full) - 1
    key, kw, kb = jax.random.split(key, 3)
    std_w = 1.0 / math.sqrt(full[i - 1] + full[i])
    last = {"w": jax.random.normal(kw, (full[i - 1], full[i]), jnp.float32) * std_w}
    if last_bias:
        last["b"] = ener_shift + jax.random.normal(kb, (1, full[i]), jnp.float32)
    layers.append(last)
    return layers, full


# ----------------------------------------------------------------------------
# Pallas kernel: fused MLP on packed (rows, pack*width) activations
# ----------------------------------------------------------------------------
def _fitting_net_kernel(x_ref, w_hid_ref, vec_ref, w_last_ref, b_last_ref, o_ref, *,
                        n_hidden, bias_rows, rdt_rows, has_last_bias):
    """One batch tile.  All control flow (bias / resnet_dt / residual choice)
    is static Python, exactly replicating the PyTorch forward."""
    x = x_ref[...].astype(jnp.float32)

    for i in range(n_hidden):
        # (rows, 128) @ (128, 128) block-diagonal weight -> native MXU shape.
        h = jnp.dot(x, w_hid_ref[i], preferred_element_type=jnp.float32)
        if bias_rows[i] is not None:
            r = bias_rows[i]
            h = h + vec_ref[r:r + 1, :]
        h = jnp.tanh(h)                          # EUP, full 128-lane vregs
        if i == 0:
            x = h
        elif rdt_rows[i] is not None:            # sizes match and resnet_dt present
            r = rdt_rows[i]
            x = h * vec_ref[r:r + 1, :] + x
        else:
            x = h + x

    out = jnp.dot(x, w_last_ref[...], preferred_element_type=jnp.float32)
    if has_last_bias:
        out = out + b_last_ref[...]
    o_ref[...] = out.astype(o_ref.dtype)


# ----------------------------------------------------------------------------
# Host-side parameter packing (block-diagonal weights, tiled bias/rdt rows)
# ----------------------------------------------------------------------------
def _pack_params(layers, full_sizes, pack):
    n_hidden = len(layers) - 1
    eye = jnp.eye(pack, dtype=jnp.float32)

    def block_diag(w):
        return jnp.kron(eye, w)                  # (pack*a, pack*b), W on the diagonal

    w_hid = jnp.stack([block_diag(layers[i]["w"]) for i in range(n_hidden)], axis=0)

    width = full_sizes[0]
    vec_rows, bias_rows, rdt_rows = [], [], []
    for i in range(n_hidden):
        layer = layers[i]
        if "b" in layer:
            bias_rows.append(len(vec_rows))
            vec_rows.append(jnp.tile(layer["b"], (1, pack)))
        else:
            bias_rows.append(None)
        use_rdt = (i > 0 and full_sizes[i + 1] == full_sizes[i] and "rdt" in layer)
        if use_rdt:
            rdt_rows.append(len(vec_rows))
            vec_rows.append(jnp.tile(layer["rdt"], (1, pack)))
        else:
            rdt_rows.append(None)
    if vec_rows:
        vec_stack = jnp.concatenate(vec_rows, axis=0)
    else:
        vec_stack = jnp.zeros((1, pack * width), jnp.float32)

    last = layers[-1]
    out_dim = full_sizes[-1]
    w_last = block_diag(last["w"])               # (pack*width, pack*out_dim)
    has_last_bias = "b" in last
    if has_last_bias:
        b_last = jnp.tile(last["b"], (1, pack))
    else:
        b_last = jnp.zeros((1, pack * out_dim), jnp.float32)

    return (w_hid, vec_stack, w_last, b_last,
            tuple(bias_rows), tuple(rdt_rows), has_last_bias)


# ----------------------------------------------------------------------------
# Wrapper
# ----------------------------------------------------------------------------
def fitting_net_forward(x, layers, full_sizes, *, rows_per_tile=1024):
    """Run the fused FittingNet forward.

    x: (N, input_dim) float32.  rows_per_tile is in *packed* rows; with the
    default pack factor of 4 (width 32), rows_per_tile=1024 is 4096 samples
    (~0.5 MiB of x per double-buffered input tile).  Sweep 512-4096 for best
    throughput on a given chip; larger tiles amortize per-step overhead, a
    multi-step grid keeps both v7x TensorCores busy.
    """
    N, in_dim = x.shape
    assert in_dim == full_sizes[0]
    assert rows_per_tile % 8 == 0
    hidden = full_sizes[1:-1]
    out_dim = full_sizes[-1]
    assert all(h == in_dim for h in hidden), "packed kernel assumes equal hidden widths"
    # TODO(synk): ragged hidden widths would need per-layer packing and no weight stacking.

    # How many samples share one 128-lane vreg row.
    pack = 128 // in_dim if (in_dim <= 128 and 128 % in_dim == 0) else 1

    (w_hid, vec_stack, w_last, b_last,
     bias_rows, rdt_rows, has_last_bias) = _pack_params(layers, full_sizes, pack)

    n_hidden = len(layers) - 1
    packed_w = pack * in_dim
    packed_o = pack * out_dim

    # Pad the batch so it divides evenly into tiles (padding rows are sliced off).
    samples_per_tile = rows_per_tile * pack
    n_tiles = max(1, -(-N // samples_per_tile))
    n_pad = n_tiles * samples_per_tile
    if n_pad != N:
        x = jnp.pad(x, ((0, n_pad - N), (0, 0)))
    x_packed = x.reshape(n_pad // pack, packed_w)    # free row-major reshape

    kernel = functools.partial(
        _fitting_net_kernel, n_hidden=n_hidden, bias_rows=bias_rows,
        rdt_rows=rdt_rows, has_last_bias=has_last_bias)

    out_packed = pl.pallas_call(
        kernel,
        out_shape=jax.ShapeDtypeStruct((n_pad // pack, packed_o), x.dtype),
        grid_spec=pltpu.PrefetchScalarGridSpec(
            num_scalar_prefetch=0,
            grid=(n_tiles,),
            in_specs=[
                pl.BlockSpec((rows_per_tile, packed_w), lambda i: (i, 0)),
                # Parameters: constant index_map -> DMA'd once, stay resident.
                pl.BlockSpec(w_hid.shape, lambda i: (0, 0, 0)),
                pl.BlockSpec(vec_stack.shape, lambda i: (0, 0)),
                pl.BlockSpec(w_last.shape, lambda i: (0, 0)),
                pl.BlockSpec(b_last.shape, lambda i: (0, 0)),
            ],
            out_specs=pl.BlockSpec((rows_per_tile, packed_o), lambda i: (i, 0)),
        ),
        compiler_params=pltpu.CompilerParams(
            dimension_semantics=("parallel",),        # batch tiles shard across TCs
            vmem_limit_bytes=32 * 1024 * 1024,        # v5e scoped default is only 16 MiB
        ),
    )(x_packed, w_hid, vec_stack, w_last, b_last)

    # Unpack: (n_pad/pack, pack*out_dim) row-major is exactly sample order.
    return out_packed.reshape(n_pad, out_dim)[:N]


# ----------------------------------------------------------------------------
# Pure-JAX reference (mirrors the PyTorch forward exactly)
# ----------------------------------------------------------------------------
def fitting_net_reference(x, layers, full_sizes):
    n_layers = len(layers)
    for i in range(n_layers - 1):
        layer = layers[i]
        h = x @ layer["w"]
        if "b" in layer:
            h = h + layer["b"]
        h = jnp.tanh(h)
        if i > 0:
            if full_sizes[i + 1] == full_sizes[i] and "rdt" in layer:
                x = h * layer["rdt"] + x
            else:
                x = h + x
        else:
            x = h
    last = layers[-1]
    x = x @ last["w"]
    if "b" in last:
        x = x + last["b"]
    return x


# ----------------------------------------------------------------------------
if __name__ == "__main__":
    key = jax.random.PRNGKey(0)

    # NEP-like configuration: input_dim=32, network_size=[32, 32, 1]
    #   -> two tanh hidden layers (second with resnet_dt residual) + scalar head.
    input_dim = 32
    network_size = [32, 32, 1]
    ener_shift = -3.0

    kparam, kx = jax.random.split(key)
    layers, full_sizes = init_fitting_net_params(
        kparam, network_size, input_dim,
        bias_flag=True, resnet_dt_flag=True,
        ener_shift=ener_shift, last_bias=True)

    N = 2000   # not a multiple of the tile -> exercises the padding path
    x = jax.random.normal(kx, (N, input_dim), jnp.float32)

    # Small tile for the demo (pack=4 -> 512 samples/tile, 4-step parallel grid).
    # Production default rows_per_tile=1024 -> 4096 samples per grid step.
    out = fitting_net_forward(x, layers, full_sizes, rows_per_tile=128)
    out = jax.block_until_ready(out)

    ref = fitting_net_reference(x, layers, full_sizes)
    assert out.shape == (N, network_size[-1])
    assert jnp.allclose(out, ref, atol=1e-5, rtol=1e-5), "mismatch vs reference"

    print("KERNEL_OK")
</pallas_src>

<mosaic_0001>
module attributes {stable_mosaic.version = 11 : i64} {
  func.func @_fitting_net_kernel(%arg0: i32, %arg1: memref<128x128xf32, #tpu.memory_space<vmem>>, %arg2: memref<2x128x128xf32, #tpu.memory_space<vmem>>, %arg3: memref<3x128xf32, #tpu.memory_space<vmem>>, %arg4: memref<128x4xf32, #tpu.memory_space<vmem>>, %arg5: memref<1x4xf32, #tpu.memory_space<vmem>>, %arg6: memref<128x4xf32, #tpu.memory_space<vmem>>) attributes {dimension_semantics = [#tpu.dimension_semantics<parallel>], iteration_bounds = array<i64: 4>, scalar_prefetch = 0 : i64, scratch_operands = 0 : i64, tpu.core_type = #tpu.core_type<tc>, window_params = [{transform_indices = @transform_0, window_bounds = array<i64: 128, 128>}, {pipeline_mode = #tpu.pipeline_mode<synchronous>, transform_indices = @transform_1, window_bounds = array<i64: 2, 128, 128>}, {pipeline_mode = #tpu.pipeline_mode<synchronous>, transform_indices = @transform_2, window_bounds = array<i64: 3, 128>}, {pipeline_mode = #tpu.pipeline_mode<synchronous>, transform_indices = @transform_3, window_bounds = array<i64: 128, 4>}, {pipeline_mode = #tpu.pipeline_mode<synchronous>, transform_indices = @transform_4, window_bounds = array<i64: 1, 4>}, {transform_indices = @transform_5, window_bounds = array<i64: 128, 4>}]} {
    %c0 = arith.constant 0 : index
    %c0_0 = arith.constant 0 : index
    %0 = vector.load %arg1[%c0, %c0_0] : memref<128x128xf32, #tpu.memory_space<vmem>>, vector<128x128xf32>
    %c0_1 = arith.constant 0 : index
    %c0_2 = arith.constant 0 : index
    %c0_3 = arith.constant 0 : index
    %1 = vector.load %arg2[%c0_1, %c0_2, %c0_3] : memref<2x128x128xf32, #tpu.memory_space<vmem>>, vector<1x128x128xf32>
    %2 = vector.shape_cast %1 : vector<1x128x128xf32> to vector<128x128xf32>
    %cst = arith.constant dense<0.000000e+00> : vector<128x128xf32>
    %3 = tpu.matmul %0, %2, %cst {dimension_numbers = #tpu.dot_dimension_numbers<[1], [0], [0], [1], [0, 0, 1, 1], [], []>} : vector<128x128xf32>, vector<128x128xf32>, vector<128x128xf32> -> vector<128x128xf32>
    %c0_4 = arith.constant 0 : index
    %c0_5 = arith.constant 0 : index
    %4 = vector.load %arg3[%c0_4, %c0_5] : memref<3x128xf32, #tpu.memory_space<vmem>>, vector<1x128xf32>
    %5 = vector.broadcast %4 : vector<1x128xf32> to vector<128x128xf32>
    %6 = arith.addf %3, %5 : vector<128x128xf32>
    %7 = math.tanh %6 : vector<128x128xf32>
    %c1 = arith.constant 1 : index
    %c0_6 = arith.constant 0 : index
    %c0_7 = arith.constant 0 : index
    %8 = vector.load %arg2[%c1, %c0_6, %c0_7] : memref<2x128x128xf32, #tpu.memory_space<vmem>>, vector<1x128x128xf32>
    %9 = vector.shape_cast %8 : vector<1x128x128xf32> to vector<128x128xf32>
    %cst_8 = arith.constant dense<0.000000e+00> : vector<128x128xf32>
    %10 = tpu.matmul %7, %9, %cst_8 {dimension_numbers = #tpu.dot_dimension_numbers<[1], [0], [0], [1], [0, 0, 1, 1], [], []>} : vector<128x128xf32>, vector<128x128xf32>, vector<128x128xf32> -> vector<128x128xf32>
    %c1_9 = arith.constant 1 : index
    %c0_10 = arith.constant 0 : index
    %11 = vector.load %arg3[%c1_9, %c0_10] : memref<3x128xf32, #tpu.memory_space<vmem>>, vector<1x128xf32>
    %12 = vector.broadcast %11 : vector<1x128xf32> to vector<128x128xf32>
    %13 = arith.addf %10, %12 : vector<128x128xf32>
    %14 = math.tanh %13 : vector<128x128xf32>
    %c2 = arith.constant 2 : index
    %c0_11 = arith.constant 0 : index
    %15 = vector.load %arg3[%c2, %c0_11] : memref<3x128xf32, #tpu.memory_space<vmem>>, vector<1x128xf32>
    %16 = vector.broadcast %15 : vector<1x128xf32> to vector<128x128xf32>
    %17 = arith.mulf %14, %16 : vector<128x128xf32>
    %18 = arith.addf %17, %7 : vector<128x128xf32>
    %c0_12 = arith.constant 0 : index
    %c0_13 = arith.constant 0 : index
    %19 = vector.load %arg4[%c0_12, %c0_13] : memref<128x4xf32, #tpu.memory_space<vmem>>, vector<128x4xf32>
    %cst_14 = arith.constant dense<0.000000e+00> : vector<128x4xf32>
    %20 = tpu.matmul %18, %19, %cst_14 {dimension_numbers = #tpu.dot_dimension_numbers<[1], [0], [0], [1], [0, 0, 1, 1], [], []>} : vector<128x128xf32>, vector<128x4xf32>, vector<128x4xf32> -> vector<128x4xf32>
    %c0_15 = arith.constant 0 : index
    %c0_16 = arith.constant 0 : index
    %21 = vector.load %arg5[%c0_15, %c0_16] : memref<1x4xf32, #tpu.memory_space<vmem>>, vector<1x4xf32>
    %22 = vector.broadcast %21 : vector<1x4xf32> to vector<128x4xf32>
    %23 = arith.addf %20, %22 : vector<128x4xf32>
    %c0_17 = arith.constant 0 : index
    %c0_18 = arith.constant 0 : index
    %24 = vector.load %arg6[%c0_17, %c0_18] : memref<128x4xf32, #tpu.memory_space<vmem>>, vector<128x4xf32>
    tpu.vector_store %arg6[%c0_17, %c0_18], %23 {strides = array<i32>} : memref<128x4xf32, #tpu.memory_space<vmem>>, vector<128x4xf32>,
    return
  }
  func.func @transform_0(%arg0: i32) -> (i32, i32) {
    %c0_i32 = arith.constant 0 : i32
    %c0_i32_0 = arith.constant 0 : i32
    return %arg0, %c0_i32 : i32, i32
  }
  func.func @transform_1(%arg0: i32) -> (i32, i32, i32) {
    %c0_i32 = arith.constant 0 : i32
    %c0_i32_0 = arith.constant 0 : i32
    %c0_i32_1 = arith.constant 0 : i32
    %c0_i32_2 = arith.constant 0 : i32
    return %c0_i32, %c0_i32_0, %c0_i32_1 : i32, i32, i32
  }
  func.func @transform_2(%arg0: i32) -> (i32, i32) {
    %c0_i32 = arith.constant 0 : i32
    %c0_i32_0 = arith.constant 0 : i32
    %c0_i32_1 = arith.constant 0 : i32
    return %c0_i32, %c0_i32_0 : i32, i32
  }
  func.func @transform_3(%arg0: i32) -> (i32, i32) {
    %c0_i32 = arith.constant 0 : i32
    %c0_i32_0 = arith.constant 0 : i32
    %c0_i32_1 = arith.constant 0 : i32
    return %c0_i32, %c0_i32_0 : i32, i32
  }
  func.func @transform_4(%arg0: i32) -> (i32, i32) {
    %c0_i32 = arith.constant 0 : i32
    %c0_i32_0 = arith.constant 0 : i32
    %c0_i32_1 = arith.constant 0 : i32
    return %c0_i32, %c0_i32_0 : i32, i32
  }
  func.func @transform_5(%arg0: i32) -> (i32, i32) {
    %c0_i32 = arith.constant 0 : i32
    %c0_i32_0 = arith.constant 0 : i32
    return %arg0, %c0_i32 : i32, i32
  }
}

</mosaic_0001>

<llo_original>
// kernel: tpu_custom_call.1
$region0: #{tpu_custom_call.1}
  #allocation0 [shape = 'u32[]', space=smem, size = 0x4, offset = 0x4, fixed_abs, tag = 'smem constant byte address 0x4 - core index']
  #allocation1 [shape = 'u32[144,128]{1,0:T(1,128)}', space=vmem, size = 0x12000, scoped, tag = 'internal scratch']
  %s0 = inlined_call_operand.hbm [shape: f32[512,128], index: 0, kind: input, shape index: {}]
  %s1 = inlined_call_operand.hbm [shape: f32[2,128,128], index: 1, kind: input, shape index: {}]
  %s2 = inlined_call_operand.vmem [shape: f32[3,128], index: 2, kind: input, shape index: {}]
  %s3 = inlined_call_operand.vmem [shape: f32[128,4], index: 3, kind: input, shape index: {}]
  %s4 = inlined_call_operand.vmem [shape: f32[1,4], index: 4, kind: input, shape index: {}]
  %s5 = inlined_call_operand.vmem [shape: f32[512,4], index: 5, kind: output, shape index: {}]
  %s6 = sld [smem:[#allocation0]]
  $region61: #{tpu_custom_call.1} parent=0
    _
  %s8 = ssub.s32 1, %s6
  %s9 = scalar_select 0, %s8, %s6
  $region1: #{tpu_custom_call.1} parent=0
    #allocation2 [shape = 'u8[131072]{0}', space=vmem, size = 0x20000, scoped, tag = 'input window, operand 0']
    #allocation3 [shape = 's32[2]{0}', space=sflag, size = 0x8, scoped, tag = 'scoped memory for tpu_custom_call.1']
    #allocation4 [shape = 'u8[131072]{0}', space=vmem, size = 0x20000, scoped, tag = 'input window, operand 1, single buffered']
    #allocation5 [shape = 's32[1]{0}', space=sflag, size = 0x4, scoped, tag = 'scoped memory for tpu_custom_call.1']
    %10 = vsyncpa [#allocation3], 0
    %s11 = scalar_lea.sflag [#allocation3], 1
    %12 = vsyncpa %s11, 0
    %13 = vsyncpa [#allocation5], 0
    loop: start=0, step=1, limit=6
    $region2: #{tpu_custom_call.1} parent=1 // loop_pre_header
      _
    $region3: #{tpu_custom_call.1} parent=1 // loop_header
      %s15 = sphi 0, %s19
      %p16 = scmp.ge.s32.totalorder %s15, 6
      %s25 = sphi 0, %s27
      %s28 = sphi 0, %s25
      %s29 = sphi 0, %s28
      %s45 = sphi 0, %s29
      %s49 = sphi 0, %s49
      %s51 = sphi 0, %s49
      %s52 = sphi 0, %s51
      %s66 = sphi 0, %s52
      %s70 = sphi 0, %s70
      %s72 = sphi 0, %s70
      %s73 = sphi 0, %s72
      %s87 = sphi 0, %s73
      %s91 = sphi 0, %s91
      %s93 = sphi 0, %s91
      %s94 = sphi 0, %s93
      %s108 = sphi 0, %s94
      %s112 = sphi 0, %s112
      %s114 = sphi 0, %s112
      %s115 = sphi 0, %s114
      %s129 = sphi 0, %s115
      %s135 = sphi 0, %s137
      %s138 = sphi 0, %s135
      %s139 = sphi 0, %s138
      %s155 = sphi 0, %s139
    $region4: #{tpu_custom_call.1} parent=1 // loop_header_branch
      %18 = sbr.rel (%p16) target = $region8
    $region5: #{tpu_custom_call.1} parent=1 // loop_body
      %s20 = ssub.s32 %s15, 1
      %s21 = ssub.s32 %s15, 2
      %s22 = sadd.s32 %s15, 1
      %s23 = ssub.s32 %s15, %s22
      %p24 = scmp.eq.s32.totalorder %s23, 0
      %s26 = sadd.s32 %s25, 1
      %s27 = scalar_select %p24, %s25, %s26
      %p30 = pneg %p24
      %p31 = scmp.eq.s32.totalorder %s15, 3
      %p32 = por %p30, %p31
      %p33 = scmp.ne.s32.totalorder %s25, %s28
      %p34 = scmp.eq.s32.totalorder %s15, 0
      %p35 = por %p33, %p34
      %p36 = scmp.ne.s32.totalorder %s25, %s28
      %p37 = scmp.eq.s32.totalorder %s20, 3
      %p38 = por %p36, %p37
      %p39 = scmp.ne.s32.totalorder %s28, %s29
      %p40 = scmp.eq.s32.totalorder %s20, 0
      %p41 = por %p39, %p40
      %p42 = scmp.ne.s32.totalorder %s28, %s29
      %p43 = scmp.eq.s32.totalorder %s21, 3
      %p44 = por %p42, %p43
      %p46 = scmp.ne.s32.totalorder %s29, %s45
      %p47 = scmp.eq.s32.totalorder %s21, 0
      %p48 = por %p46, %p47
      %s50 = sadd.s32 %s49, 1
      %p53 = scmp.eq.s32.totalorder %s15, 3
      %p54 = scmp.ne.s32.totalorder %s49, %s51
      %p55 = scmp.eq.s32.totalorder %s15, 0
      %p56 = por %p54, %p55
      %p57 = scmp.ne.s32.totalorder %s49, %s51
      %p58 = scmp.eq.s32.totalorder %s20, 3
      %p59 = por %p57, %p58
      %p60 = scmp.ne.s32.totalorder %s51, %s52
      %p61 = scmp.eq.s32.totalorder %s20, 0
      %p62 = por %p60, %p61
      %p63 = scmp.ne.s32.totalorder %s51, %s52
      %p64 = scmp.eq.s32.totalorder %s21, 3
      %p65 = por %p63, %p64
      %p67 = scmp.ne.s32.totalorder %s52, %s66
      %p68 = scmp.eq.s32.totalorder %s21, 0
      %p69 = por %p67, %p68
      %s71 = sadd.s32 %s70, 1
      %p74 = scmp.eq.s32.totalorder %s15, 3
      %p75 = scmp.ne.s32.totalorder %s70, %s72
      %p76 = scmp.eq.s32.totalorder %s15, 0
      %p77 = por %p75, %p76
      %p78 = scmp.ne.s32.totalorder %s70, %s72
      %p79 = scmp.eq.s32.totalorder %s20, 3
      %p80 = por %p78, %p79
      %p81 = scmp.ne.s32.totalorder %s72, %s73
      %p82 = scmp.eq.s32.totalorder %s20, 0
      %p83 = por %p81, %p82
      %p84 = scmp.ne.s32.totalorder %s72, %s73
      %p85 = scmp.eq.s32.totalorder %s21, 3
      %p86 = por %p84, %p85
      %p88 = scmp.ne.s32.totalorder %s73, %s87
      %p89 = scmp.eq.s32.totalorder %s21, 0
      %p90 = por %p88, %p89
      %s92 = sadd.s32 %s91, 1
      %p95 = scmp.eq.s32.totalorder %s15, 3
      %p96 = scmp.ne.s32.totalorder %s91, %s93
      %p97 = scmp.eq.s32.totalorder %s15, 0
      %p98 = por %p96, %p97
      %p99 = scmp.ne.s32.totalorder %s91, %s93
      %p100 = scmp.eq.s32.totalorder %s20, 3
      %p101 = por %p99, %p100
      %p102 = scmp.ne.s32.totalorder %s93, %s94
      %p103 = scmp.eq.s32.totalorder %s20, 0
      %p104 = por %p102, %p103
      %p105 = scmp.ne.s32.totalorder %s93, %s94
      %p106 = scmp.eq.s32.totalorder %s21, 3
      %p107 = por %p105, %p106
      %p109 = scmp.ne.s32.totalorder %s94, %s108
      %p110 = scmp.eq.s32.totalorder %s21, 0
      %p111 = por %p109, %p110
      %s113 = sadd.s32 %s112, 1
      %p116 = scmp.eq.s32.totalorder %s15, 3
      %p117 = scmp.ne.s32.totalorder %s112, %s114
      %p118 = scmp.eq.s32.totalorder %s15, 0
      %p119 = por %p117, %p118
      %p120 = scmp.ne.s32.totalorder %s112, %s114
      %p121 = scmp.eq.s32.totalorder %s20, 3
      %p122 = por %p120, %p121
      %p123 = scmp.ne.s32.totalorder %s114, %s115
      %p124 = scmp.eq.s32.totalorder %s20, 0
      %p125 = por %p123, %p124
      %p126 = scmp.ne.s32.totalorder %s114, %s115
      %p127 = scmp.eq.s32.totalorder %s21, 3
      %p128 = por %p126, %p127
      %p130 = scmp.ne.s32.totalorder %s115, %s129
      %p131 = scmp.eq.s32.totalorder %s21, 0
      %p132 = por %p130, %p131
      %s133 = ssub.s32 %s15, %s22
      %p134 = scmp.eq.s32.totalorder %s133, 0
      %s136 = sadd.s32 %s135, 1
      %s137 = scalar_select %p134, %s135, %s136
      %p140 = pneg %p134
      %p141 = scmp.eq.s32.totalorder %s15, 3
      %p142 = por %p140, %p141
      %p143 = scmp.ne.s32.totalorder %s135, %s138
      %p144 = scmp.eq.s32.totalorder %s15, 0
      %p145 = por %p143, %p144
      %p146 = scmp.ne.s32.totalorder %s135, %s138
      %p147 = scmp.eq.s32.totalorder %s20, 3
      %p148 = por %p146, %p147
      %p149 = scmp.ne.s32.totalorder %s138, %s139
      %p150 = scmp.eq.s32.totalorder %s20, 0
      %p151 = por %p149, %p150
      %p152 = scmp.ne.s32.totalorder %s138, %s139
      %p153 = scmp.eq.s32.totalorder %s21, 3
      %p154 = por %p152, %p153
      %p156 = scmp.ne.s32.totalorder %s139, %s155
      %p157 = scmp.eq.s32.totalorder %s21, 0
      %p158 = por %p156, %p157
      %p159 = scmp.le.s32.totalorder 1, %s15
      %p160 = scmp.lt.s32.totalorder %s15, 5
      %p161 = pnand %p159, %p160
      %p162 = pneg %p161
      // Predicated region
      $region9: #{tpu_custom_call.1} parent=5 // pred_check
        _
      $region10: #{tpu_custom_call.1} parent=5 // pred_check_branch
        %164 = sbr.rel (%p161) target = $region12
      $region11: #{tpu_custom_call.1} parent=5 // pred_region
        %s165 = ssub.s32 %s15, 1
        // Predicated region
        $region13: #{tpu_custom_call.1} parent=11 // pred_check
          %p166 = pneg %p62
        $region14: #{tpu_custom_call.1} parent=11 // pred_check_branch
          %168 = sbr.rel (%p166) target = $region16
        $region15: #{tpu_custom_call.1} parent=11 // pred_region
          %s170 = ssub.s32 4096, 4096
          %171 = vsyncadd [#allocation5], %s170
          %s172 = sshll.u32 [#allocation4], 4
          %s173 = int_to_ptr.vmem [resolvable:$true] %s172
          %178 = dma.hbm_to_vmem [thread:$0]  %s1, 4096, %s173, [#allocation5], 128, 128, 8
        $region16: #{tpu_custom_call.1} parent=11 // pred_fallthru
          _
        // Predicated region
        $region17: #{tpu_custom_call.1} parent=11 // pred_check
          %p179 = pneg %p83
        $region18: #{tpu_custom_call.1} parent=11 // pred_check_branch
          %181 = sbr.rel (%p179) target = $region20
        $region19: #{tpu_custom_call.1} parent=11 // pred_region
          _
        $region20: #{tpu_custom_call.1} parent=11 // pred_fallthru
          _
        // Predicated region
        $region21: #{tpu_custom_call.1} parent=11 // pred_check
          %p182 = pneg %p104
        $region22: #{tpu_custom_call.1} parent=11 // pred_check_branch
          %184 = sbr.rel (%p182) target = $region24
        $region23: #{tpu_custom_call.1} parent=11 // pred_region
          _
        $region24: #{tpu_custom_call.1} parent=11 // pred_fallthru
          _
        // Predicated region
        $region25: #{tpu_custom_call.1} parent=11 // pred_check
          %p185 = pneg %p125
        $region26: #{tpu_custom_call.1} parent=11 // pred_check_branch
          %187 = sbr.rel (%p185) target = $region28
        $region27: #{tpu_custom_call.1} parent=11 // pred_region
          _
        $region28: #{tpu_custom_call.1} parent=11 // pred_fallthru
          _
      $region12: #{tpu_custom_call.1} parent=5 // pred_fallthru
        _
      %p188 = scmp.lt.s32.totalorder %s15, 4
      // Predicated region
      $region29: #{tpu_custom_call.1} parent=5 // pred_check
        %p189 = pneg %p188
      $region30: #{tpu_custom_call.1} parent=5 // pred_check_branch
        %191 = sbr.rel (%p189) target = $region32
      $region31: #{tpu_custom_call.1} parent=5 // pred_region
        // Predicated region
        $region33: #{tpu_custom_call.1} parent=31 // pred_check
          %p192 = pneg %p35
        $region34: #{tpu_custom_call.1} parent=31 // pred_check_branch
          %194 = sbr.rel (%p192) target = $region36
        $region35: #{tpu_custom_call.1} parent=31 // pred_region
          %s195 = sand.u32 %s25, 1
          %s196 = scalar_lea.sflag [#allocation3], %s195
          %s197 = sand.u32 %s25, 1
          %s198 = smul.addr %s197, 128
          %s199 = scalar_lea.vmem [#allocation2], %s198
          %s200 = smul.u32 16, %s15
          %s202 = ssub.s32 2048, 2048
          %203 = vsyncadd %s196, %s202
          %s204 = smul.addr %s200, 128
          %s205 = scalar_lea.hbm %s0, %s204
          %s206 = sshll.u32 %s199, 4
          %s207 = int_to_ptr.vmem [resolvable:$true] %s206
          %212 = dma.hbm_to_vmem [thread:$0]  %s205, 2048, %s207, %s196, 128, 128, 8
        $region36: #{tpu_custom_call.1} parent=31 // pred_fallthru
          _
      $region32: #{tpu_custom_call.1} parent=5 // pred_fallthru
        _
      %p213 = scmp.le.s32.totalorder 1, %s15
      %p214 = scmp.lt.s32.totalorder %s15, 5
      %p215 = pnand %p213, %p214
      %p216 = pneg %p215
      // Predicated region
      $region37: #{tpu_custom_call.1} parent=5 // pred_check
        _
      $region38: #{tpu_custom_call.1} parent=5 // pred_check_branch
        %218 = sbr.rel (%p215) target = $region40
      $region39: #{tpu_custom_call.1} parent=5 // pred_region
        %s219 = ssub.s32 %s15, 1
        %s220 = sand.u32 %s28, 1
        %s221 = scalar_lea.sflag [#allocation3], %s220
        %s222 = sand.u32 %s28, 1
        %s223 = smul.addr %s222, 128
        %s224 = scalar_lea.vmem [#allocation2], %s223
        // Predicated region
        $region41: #{tpu_custom_call.1} parent=39 // pred_check
          %p225 = pneg %p41
        $region42: #{tpu_custom_call.1} parent=39 // pred_check_branch
          %227 = sbr.rel (%p225) target = $region44
        $region43: #{tpu_custom_call.1} parent=39 // pred_region
          %228 = dma.done %s221, 2048
        $region44: #{tpu_custom_call.1} parent=39 // pred_fallthru
          _
        // Predicated region
        $region45: #{tpu_custom_call.1} parent=39 // pred_check
          %p229 = pneg %p62
        $region46: #{tpu_custom_call.1} parent=39 // pred_check_branch
          %231 = sbr.rel (%p229) target = $region48
        $region47: #{tpu_custom_call.1} parent=39 // pred_region
          %232 = dma.done [#allocation5], 4096
        $region48: #{tpu_custom_call.1} parent=39 // pred_fallthru
          _
        %s233 = sand.u32 %s28, 1
        %s234 = scalar_lea.sflag [#allocation3], %s233
        %s235 = sand.u32 %s28, 1
        %s236 = smul.addr %s235, 128
        %s237 = scalar_lea.vmem [#allocation2], %s236
        %p238 = pneg %p41
        %p239 = pneg %p38
        %p240 = pneg %p62
        %p241 = pneg %p59
        %p242 = pneg %p83
        %p243 = pneg %p80
        %p244 = pneg %p104
        %p245 = pneg %p101
        %p246 = pneg %p125
        %p247 = pneg %p122
        %p248 = pneg %p151
        %p249 = pneg %p148
        %s250 = smul.u32 16, %s20
        %p251 = scmp.lt.s32.totalorder %s250, 63
        %s252 = scalar_select %p251, %s250, 63
        %s253 = smul.addr %s252, 8
        %s254 = scalar_lea.vmem %s5, %s253
        %s255 = smul.u32 16, %s20
        %s256 = smul.u32 16, %s20
        %p257 = scmp.lt.s32.totalorder %s256, 63
        %s258 = scalar_select %p257, %s256, 63
        %s259 = smul.addr %s258, 8
        %s260 = scalar_lea.vmem %s5, %s259
        %s261 = smul.u32 16, %s20
        %v262 = vld [vmem:[%s224] sm:$0xff]
        %v263 = vld [vmem:[%s224 + $0x8] sm:$0xff]
        %v264 = vld [vmem:[%s224 + $0x10] sm:$0xff]
        %v265 = vld [vmem:[%s224 + $0x18] sm:$0xff]
        %v266 = vld [vmem:[%s224 + $0x20] sm:$0xff]
        %v267 = vld [vmem:[%s224 + $0x28] sm:$0xff]
        %v268 = vld [vmem:[%s224 + $0x30] sm:$0xff]
        %v269 = vld [vmem:[%s224 + $0x38] sm:$0xff]
        %v270 = vld [vmem:[%s224 + $0x40] sm:$0xff]
        %v271 = vld [vmem:[%s224 + $0x48] sm:$0xff]
        %v272 = vld [vmem:[%s224 + $0x50] sm:$0xff]
        %v273 = vld [vmem:[%s224 + $0x58] sm:$0xff]
        %v274 = vld [vmem:[%s224 + $0x60] sm:$0xff]
        %v275 = vld [vmem:[%s224 + $0x68] sm:$0xff]
        %v276 = vld [vmem:[%s224 + $0x70] sm:$0xff]
        %v277 = vld [vmem:[%s224 + $0x78] sm:$0xff]
        %v278 = vld [vmem:[#allocation4] sm:$0xff]
        %v279 = vld [vmem:[#allocation4 + $0x8] sm:$0xff]
        %v280 = vld [vmem:[#allocation4 + $0x10] sm:$0xff]
        %v281 = vld [vmem:[#allocation4 + $0x18] sm:$0xff]
        %v282 = vld [vmem:[#allocation4 + $0x20] sm:$0xff]
        %v283 = vld [vmem:[#allocation4 + $0x28] sm:$0xff]
        %v284 = vld [vmem:[#allocation4 + $0x30] sm:$0xff]
        %v285 = vld [vmem:[#allocation4 + $0x38] sm:$0xff]
        %v286 = vld [vmem:[#allocation4 + $0x40] sm:$0xff]
        %v287 = vld [vmem:[#allocation4 + $0x48] sm:$0xff]
        %v288 = vld [vmem:[#allocation4 + $0x50] sm:$0xff]
        %v289 = vld [vmem:[#allocation4 + $0x58] sm:$0xff]
        %v290 = vld [vmem:[#allocation4 + $0x60] sm:$0xff]
        %v291 = vld [vmem:[#allocation4 + $0x68] sm:$0xff]
        %v292 = vld [vmem:[#allocation4 + $0x70] sm:$0xff]
        %v293 = vld [vmem:[#allocation4 + $0x78] sm:$0xff]
        %v294 = vld [vmem:[%s2] sm:$0x1]
        %v295 = vlaneseq
        %v296 = vshrl.u32 %v295, 7
        %v297 = vsub.s32 0, %v296
        %v298 = vrot.slane %v294, %v297
        %299 = vmatprep.subr.mxu0 0.0
        %300 = vmatpush1.msra.mxu0 %v278
        %301 = vmatprep.subr.mxu0 0.0
        %302 = vmatpush1.msra.mxu0 %v279
        %303 = vmatprep.subr.mxu0 0.0
        %304 = vmatpush1.msra.mxu0 %v280
        %305 = vmatprep.subr.mxu0 0.0
        %306 = vmatpush1.msra.mxu0 %v281
        %307 = vmatprep.subr.mxu0 0.0
        %308 = vmatpush1.msra.mxu0 %v282
        %309 = vmatprep.subr.mxu0 0.0
        %310 = vmatpush1.msra.mxu0 %v283
        %311 = vmatprep.subr.mxu0 0.0
        %312 = vmatpush1.msra.mxu0 %v284
        %313 = vmatprep.subr.mxu0 0.0
        %314 = vmatpush1.msra.mxu0 %v285
        %315 = vmatprep.subr.mxu0 0.0
        %316 = vmatpush1.msra.mxu0 %v286
        %317 = vmatprep.subr.mxu0 0.0
        %318 = vmatpush1.msra.mxu0 %v287
        %319 = vmatprep.subr.mxu0 0.0
        %320 = vmatpush1.msra.mxu0 %v288
        %321 = vmatprep.subr.mxu0 0.0
        %322 = vmatpush1.msra.mxu0 %v289
        %323 = vmatprep.subr.mxu0 0.0
        %324 = vmatpush1.msra.mxu0 %v290
        %325 = vmatprep.subr.mxu0 0.0
        %326 = vmatpush1.msra.mxu0 %v291
        %327 = vmatprep.subr.mxu0 0.0
        %328 = vmatpush1.msra.mxu0 %v292
        %329 = vmatprep.subr.mxu0 0.0
        %330 = vmatpush1.msra.mxu0 %v293
        %331 = vmatprep.subr.mxu0 0.0
        %332 = vmatpush1.msra.mxu0 0.0
        %333 = vmatprep.subr.mxu0 0.0
        %334 = vmatpush1.msra.mxu0 0.0
        %335 = vmatprep.subr.mxu0 0.0
        %336 = vmatpush1.msra.mxu0 0.0
        %337 = vmatprep.subr.mxu0 0.0
        %338 = vmatpush1.msra.mxu0 0.0
        %339 = vmatprep.subr.mxu0 0.0
        %340 = vmatpush1.msra.mxu0 0.0
        %341 = vmatprep.subr.mxu0 0.0
        %342 = vmatpush1.msra.mxu0 0.0
        %343 = vmatprep.subr.mxu0 0.0
        %344 = vmatpush1.msra.mxu0 0.0
        %345 = vmatprep.subr.mxu0 0.0
        %346 = vmatpush1.msra.mxu0 0.0
        %347 = vmatprep.subr.mxu0 0.0
        %348 = vmatpush1.msra.mxu0 0.0
        %349 = vmatprep.subr.mxu0 0.0
        %350 = vmatpush1.msra.mxu0 0.0
        %351 = vmatprep.subr.mxu0 0.0
        %352 = vmatpush1.msra.mxu0 0.0
        %353 = vmatprep.subr.mxu0 0.0
        %354 = vmatpush1.msra.mxu0 0.0
        %355 = vmatprep.subr.mxu0 0.0
        %356 = vmatpush1.msra.mxu0 0.0
        %357 = vmatprep.subr.mxu0 0.0
        %358 = vmatpush1.msra.mxu0 0.0
        %359 = vmatprep.subr.mxu0 0.0
        %360 = vmatpush1.msra.mxu0 0.0
        %361 = vmatprep.subr.mxu0 0.0
        %362 = vmatpush1.msra.mxu0 0.0
        %363 = vmatprep.mubr.f32.mxu0 0.0
        %364 = vmatmul.mubr.f32.gmra.mrb[0].mxu0 %v262
        %v365 = vpop.f32.mrb[0].mxu0
        %v366 = vadd.f32 %v298, %v365
        %v367 = vpop.f32.mrb[0].mxu0
        %368 = vmatprep.mubr.f32.mxu0 0.0
        %369 = vmatmul.mubr.f32.gmra.mrb[0].mxu0 %v263
        %v370 = vpop.f32.mrb[0].mxu0
        %v371 = vadd.f32 %v298, %v370
        %v372 = vpop.f32.mrb[0].mxu0
        %373 = vmatprep.mubr.f32.mxu0 0.0
        %374 = vmatmul.mubr.f32.gmra.mrb[0].mxu0 %v264
        %v375 = vpop.f32.mrb[0].mxu0
        %v376 = vadd.f32 %v298, %v375
        %v377 = vpop.f32.mrb[0].mxu0
        %378 = vmatprep.mubr.f32.mxu0 0.0
        %379 = vmatmul.mubr.f32.gmra.mrb[0].mxu0 %v265
        %v380 = vpop.f32.mrb[0].mxu0
        %v381 = vadd.f32 %v298, %v380
        %v382 = vpop.f32.mrb[0].mxu0
        %383 = vmatprep.mubr.f32.mxu0 0.0
        %384 = vmatmul.mubr.f32.gmra.mrb[0].mxu0 %v266
        %v385 = vpop.f32.mrb[0].mxu0
        %v386 = vadd.f32 %v298, %v385
        %v387 = vpop.f32.mrb[0].mxu0
        %388 = vmatprep.mubr.f32.mxu0 0.0
        %389 = vmatmul.mubr.f32.gmra.mrb[0].mxu0 %v267
        %v390 = vpop.f32.mrb[0].mxu0
        %v391 = vadd.f32 %v298, %v390
        %v392 = vpop.f32.mrb[0].mxu0
        %393 = vmatprep.mubr.f32.mxu0 0.0
        %394 = vmatmul.mubr.f32.gmra.mrb[0].mxu0 %v268
        %v395 = vpop.f32.mrb[0].mxu0
        %v396 = vadd.f32 %v298, %v395
        %v397 = vpop.f32.mrb[0].mxu0
        %398 = vmatprep.mubr.f32.mxu0 0.0
        %399 = vmatmul.mubr.f32.gmra.mrb[0].mxu0 %v269
        %v400 = vpop.f32.mrb[0].mxu0
        %v401 = vadd.f32 %v298, %v400
        %v402 = vpop.f32.mrb[0].mxu0
        %403 = vmatprep.mubr.f32.mxu0 0.0
        %404 = vmatmul.mubr.f32.gmra.mrb[0].mxu0 %v270
        %v405 = vpop.f32.mrb[0].mxu0
        %v406 = vadd.f32 %v298, %v405
        %v407 = vpop.f32.mrb[0].mxu0
        %408 = vmatprep.mubr.f32.mxu0 0.0
        %409 = vmatmul.mubr.f32.gmra.mrb[0].mxu0 %v271
        %v410 = vpop.f32.mrb[0].mxu0
        %v411 = vadd.f32 %v298, %v410
        %v412 = vpop.f32.mrb[0].mxu0
        %413 = vmatprep.mubr.f32.mxu0 0.0
        %414 = vmatmul.mubr.f32.gmra.mrb[0].mxu0 %v272
        %v415 = vpop.f32.mrb[0].mxu0
        %v416 = vadd.f32 %v298, %v415
        %v417 = vpop.f32.mrb[0].mxu0
        %418 = vmatprep.mubr.f32.mxu0 0.0
        %419 = vmatmul.mubr.f32.gmra.mrb[0].mxu0 %v273
        %v420 = vpop.f32.mrb[0].mxu0
        %v421 = vadd.f32 %v298, %v420
        %v422 = vpop.f32.mrb[0].mxu0
        %423 = vmatprep.mubr.f32.mxu0 0.0
        %424 = vmatmul.mubr.f32.gmra.mrb[0].mxu0 %v274
        %v425 = vpop.f32.mrb[0].mxu0
        %v426 = vadd.f32 %v298, %v425
        %v427 = vpop.f32.mrb[0].mxu0
        %428 = vmatprep.mubr.f32.mxu0 0.0
        %429 = vmatmul.mubr.f32.gmra.mrb[0].mxu0 %v275
        %v430 = vpop.f32.mrb[0].mxu0
        %v431 = vadd.f32 %v298, %v430
        %v432 = vpop.f32.mrb[0].mxu0
        %433 = vmatprep.mubr.f32.mxu0 0.0
        %434 = vmatmul.mubr.f32.gmra.mrb[0].mxu0 %v276
        %v435 = vpop.f32.mrb[0].mxu0
        %v436 = vadd.f32 %v298, %v435
        %v437 = vpop.f32.mrb[0].mxu0
        %438 = vmatprep.mubr.f32.mxu0 0.0
        %439 = vmatmul.mubr.f32.gmra.mrb[0].mxu0 %v277
        %v440 = vpop.f32.mrb[0].mxu0
        %v441 = vadd.f32 %v298, %v440
        %v442 = vpop.f32.mrb[0].mxu0
        %443 = vdwg.mxu0
        %v444 = vtanh.pop %v366
        %v445 = vtanh.pop %v371
        %v446 = vtanh.pop %v376
        %v447 = vtanh.pop %v381
        %v448 = vtanh.pop %v386
        %v449 = vtanh.pop %v391
        %v450 = vtanh.pop %v396
        %v451 = vtanh.pop %v401
        %v452 = vtanh.pop %v406
        %v453 = vtanh.pop %v411
        %v454 = vtanh.pop %v416
        %v455 = vtanh.pop %v421
        %v456 = vtanh.pop %v426
        %v457 = vtanh.pop %v431
        %v458 = vtanh.pop %v436
        %v459 = vtanh.pop %v441
        %s460 = scalar_lea.vmem [#allocation4], 128
        %v461 = vld [vmem:[%s460] sm:$0xff]
        %v462 = vld [vmem:[%s460 + $0x8] sm:$0xff]
        %v463 = vld [vmem:[%s460 + $0x10] sm:$0xff]
        %v464 = vld [vmem:[%s460 + $0x18] sm:$0xff]
        %v465 = vld [vmem:[%s460 + $0x20] sm:$0xff]
        %v466 = vld [vmem:[%s460 + $0x28] sm:$0xff]
        %v467 = vld [vmem:[%s460 + $0x30] sm:$0xff]
        %v468 = vld [vmem:[%s460 + $0x38] sm:$0xff]
        %v469 = vld [vmem:[%s460 + $0x40] sm:$0xff]
        %v470 = vld [vmem:[%s460 + $0x48] sm:$0xff]
        %v471 = vld [vmem:[%s460 + $0x50] sm:$0xff]
        %v472 = vld [vmem:[%s460 + $0x58] sm:$0xff]
        %v473 = vld [vmem:[%s460 + $0x60] sm:$0xff]
        %v474 = vld [vmem:[%s460 + $0x68] sm:$0xff]
        %v475 = vld [vmem:[%s460 + $0x70] sm:$0xff]
        %v476 = vld [vmem:[%s460 + $0x78] sm:$0xff]
        %v477 = vld [vmem:[%s2 + $0x1] sm:$0x1]
        %v478 = vlaneseq
        %v479 = vshrl.u32 %v478, 7
        %v480 = vsub.s32 0, %v479
        %v481 = vrot.slane %v477, %v480
        %482 = vmatprep.subr.mxu0 0.0
        %483 = vmatpush1.msra.mxu0 %v461
        %484 = vmatprep.subr.mxu0 0.0
        %485 = vmatpush1.msra.mxu0 %v462
        %486 = vmatprep.subr.mxu0 0.0
        %487 = vmatpush1.msra.mxu0 %v463
        %488 = vmatprep.subr.mxu0 0.0
        %489 = vmatpush1.msra.mxu0 %v464
        %490 = vmatprep.subr.mxu0 0.0
        %491 = vmatpush1.msra.mxu0 %v465
        %492 = vmatprep.subr.mxu0 0.0
        %493 = vmatpush1.msra.mxu0 %v466
        %494 = vmatprep.subr.mxu0 0.0
        %495 = vmatpush1.msra.mxu0 %v467
        %496 = vmatprep.subr.mxu0 0.0
        %497 = vmatpush1.msra.mxu0 %v468
        %498 = vmatprep.subr.mxu0 0.0
        %499 = vmatpush1.msra.mxu0 %v469
        %500 = vmatprep.subr.mxu0 0.0
        %501 = vmatpush1.msra.mxu0 %v470
        %502 = vmatprep.subr.mxu0 0.0
        %503 = vmatpush1.msra.mxu0 %v471
        %504 = vmatprep.subr.mxu0 0.0
        %505 = vmatpush1.msra.mxu0 %v472
        %506 = vmatprep.subr.mxu0 0.0
        %507 = vmatpush1.msra.mxu0 %v473
        %508 = vmatprep.subr.mxu0 0.0
        %509 = vmatpush1.msra.mxu0 %v474
        %510 = vmatprep.subr.mxu0 0.0
        %511 = vmatpush1.msra.mxu0 %v475
        %512 = vmatprep.subr.mxu0 0.0
        %513 = vmatpush1.msra.mxu0 %v476
        %514 = vmatprep.subr.mxu0 0.0
        %515 = vmatpush1.msra.mxu0 0.0
        %516 = vmatprep.subr.mxu0 0.0
        %517 = vmatpush1.msra.mxu0 0.0
        %518 = vmatprep.subr.mxu0 0.0
        %519 = vmatpush1.msra.mxu0 0.0
        %520 = vmatprep.subr.mxu0 0.0
        %521 = vmatpush1.msra.mxu0 0.0
        %522 = vmatprep.subr.mxu0 0.0
        %523 = vmatpush1.msra.mxu0 0.0
        %524 = vmatprep.subr.mxu0 0.0
        %525 = vmatpush1.msra.mxu0 0.0
        %526 = vmatprep.subr.mxu0 0.0
        %527 = vmatpush1.msra.mxu0 0.0
        %528 = vmatprep.subr.mxu0 0.0
        %529 = vmatpush1.msra.mxu0 0.0
        %530 = vmatprep.subr.mxu0 0.0
        %531 = vmatpush1.msra.mxu0 0.0
        %532 = vmatprep.subr.mxu0 0.0
        %533 = vmatpush1.msra.mxu0 0.0
        %534 = vmatprep.subr.mxu0 0.0
        %535 = vmatpush1.msra.mxu0 0.0
        %536 = vmatprep.subr.mxu0 0.0
        %537 = vmatpush1.msra.mxu0 0.0
        %538 = vmatprep.subr.mxu0 0.0
        %539 = vmatpush1.msra.mxu0 0.0
        %540 = vmatprep.subr.mxu0 0.0
        %541 = vmatpush1.msra.mxu0 0.0
        %542 = vmatprep.subr.mxu0 0.0
        %543 = vmatpush1.msra.mxu0 0.0
        %544 = vmatprep.subr.mxu0 0.0
        %545 = vmatpush1.msra.mxu0 0.0
        %546 = vmatprep.mubr.f32.mxu0 0.0
        %547 = vmatmul.mubr.f32.gmra.mrb[0].mxu0 %v444
        %v548 = vpop.f32.mrb[0].mxu0
        %v549 = vadd.f32 %v481, %v548
        %v550 = vpop.f32.mrb[0].mxu0
        %551 = vmatprep.mubr.f32.mxu0 0.0
        %552 = vmatmul.mubr.f32.gmra.mrb[0].mxu0 %v445
        %v553 = vpop.f32.mrb[0].mxu0
        %v554 = vadd.f32 %v481, %v553
        %v555 = vpop.f32.mrb[0].mxu0
        %556 = vmatprep.mubr.f32.mxu0 0.0
        %557 = vmatmul.mubr.f32.gmra.mrb[0].mxu0 %v446
        %v558 = vpop.f32.mrb[0].mxu0
        %v559 = vadd.f32 %v481, %v558
        %v560 = vpop.f32.mrb[0].mxu0
        %561 = vmatprep.mubr.f32.mxu0 0.0
        %562 = vmatmul.mubr.f32.gmra.mrb[0].mxu0 %v447
        %v563 = vpop.f32.mrb[0].mxu0
        %v564 = vadd.f32 %v481, %v563
        %v565 = vpop.f32.mrb[0].mxu0
        %566 = vmatprep.mubr.f32.mxu0 0.0
        %567 = vmatmul.mubr.f32.gmra.mrb[0].mxu0 %v448
        %v568 = vpop.f32.mrb[0].mxu0
        %v569 = vadd.f32 %v481, %v568
        %v570 = vpop.f32.mrb[0].mxu0
        %571 = vmatprep.mubr.f32.mxu0 0.0
        %572 = vmatmul.mubr.f32.gmra.mrb[0].mxu0 %v449
        %v573 = vpop.f32.mrb[0].mxu0
        %v574 = vadd.f32 %v481, %v573
        %v575 = vpop.f32.mrb[0].mxu0
        %576 = vmatprep.mubr.f32.mxu0 0.0
        %577 = vmatmul.mubr.f32.gmra.mrb[0].mxu0 %v450
        %v578 = vpop.f32.mrb[0].mxu0
        %v579 = vadd.f32 %v481, %v578
        %v580 = vpop.f32.mrb[0].mxu0
        %581 = vmatprep.mubr.f32.mxu0 0.0
        %582 = vmatmul.mubr.f32.gmra.mrb[0].mxu0 %v451
        %v583 = vpop.f32.mrb[0].mxu0
        %v584 = vadd.f32 %v481, %v583
        %v585 = vpop.f32.mrb[0].mxu0
        %586 = vmatprep.mubr.f32.mxu0 0.0
        %587 = vmatmul.mubr.f32.gmra.mrb[0].mxu0 %v452
        %v588 = vpop.f32.mrb[0].mxu0
        %v589 = vadd.f32 %v481, %v588
        %v590 = vpop.f32.mrb[0].mxu0
        %591 = vmatprep.mubr.f32.mxu0 0.0
        %592 = vmatmul.mubr.f32.gmra.mrb[0].mxu0 %v453
        %v593 = vpop.f32.mrb[0].mxu0
        %v594 = vadd.f32 %v481, %v593
        %v595 = vpop.f32.mrb[0].mxu0
        %596 = vmatprep.mubr.f32.mxu0 0.0
        %597 = vmatmul.mubr.f32.gmra.mrb[0].mxu0 %v454
        %v598 = vpop.f32.mrb[0].mxu0
        %v599 = vadd.f32 %v481, %v598
        %v600 = vpop.f32.mrb[0].mxu0
        %601 = vmatprep.mubr.f32.mxu0 0.0
        %602 = vmatmul.mubr.f32.gmra.mrb[0].mxu0 %v455
        %v603 = vpop.f32.mrb[0].mxu0
        %v604 = vadd.f32 %v481, %v603
        %v605 = vpop.f32.mrb[0].mxu0
        %606 = vmatprep.mubr.f32.mxu0 0.0
        %607 = vmatmul.mubr.f32.gmra.mrb[0].mxu0 %v456
        %v608 = vpop.f32.mrb[0].mxu0
        %v609 = vadd.f32 %v481, %v608
        %v610 = vpop.f32.mrb[0].mxu0
        %611 = vmatprep.mubr.f32.mxu0 0.0
        %612 = vmatmul.mubr.f32.gmra.mrb[0].mxu0 %v457
        %v613 = vpop.f32.mrb[0].mxu0
        %v614 = vadd.f32 %v481, %v613
        %v615 = vpop.f32.mrb[0].mxu0
        %616 = vmatprep.mubr.f32.mxu0 0.0
        %617 = vmatmul.mubr.f32.gmra.mrb[0].mxu0 %v458
        %v618 = vpop.f32.mrb[0].mxu0
        %v619 = vadd.f32 %v481, %v618
        %v620 = vpop.f32.mrb[0].mxu0
        %621 = vmatprep.mubr.f32.mxu0 0.0
        %622 = vmatmul.mubr.f32.gmra.mrb[0].mxu0 %v459
        %v623 = vpop.f32.mrb[0].mxu0
        %v624 = vadd.f32 %v481, %v623
        %v625 = vpop.f32.mrb[0].mxu0
        %626 = vdwg.mxu0
        %v627 = vtanh.pop %v549
        %v628 = vtanh.pop %v554
        %v629 = vtanh.pop %v559
        %v630 = vtanh.pop %v564
        %v631 = vtanh.pop %v569
        %v632 = vtanh.pop %v574
        %v633 = vtanh.pop %v579
        %v634 = vtanh.pop %v584
        %v635 = vtanh.pop %v589
        %v636 = vtanh.pop %v594
        %v637 = vtanh.pop %v599
        %v638 = vtanh.pop %v604
        %v639 = vtanh.pop %v609
        %v640 = vtanh.pop %v614
        %v641 = vtanh.pop %v619
        %v642 = vtanh.pop %v624
        %v643 = vld [vmem:[%s2 + $0x2] sm:$0x1]
        %v644 = vlaneseq
        %v645 = vshrl.u32 %v644, 7
        %v646 = vsub.s32 0, %v645
        %v647 = vrot.slane %v643, %v646
        %v648 = vmul.f32 %v627, %v647
        %v649 = vmul.f32 %v628, %v647
        %v650 = vmul.f32 %v629, %v647
        %v651 = vmul.f32 %v630, %v647
        %v652 = vmul.f32 %v631, %v647
        %v653 = vmul.f32 %v632, %v647
        %v654 = vmul.f32 %v633, %v647
        %v655 = vmul.f32 %v634, %v647
        %v656 = vmul.f32 %v635, %v647
        %v657 = vmul.f32 %v636, %v647
        %v658 = vmul.f32 %v637, %v647
        %v659 = vmul.f32 %v638, %v647
        %v660 = vmul.f32 %v639, %v647
        %v661 = vmul.f32 %v640, %v647
        %v662 = vmul.f32 %v641, %v647
        %v663 = vmul.f32 %v642, %v647
        %v664 = vadd.f32 %v648, %v444
        %v665 = vadd.f32 %v649, %v445
        %v666 = vadd.f32 %v650, %v446
        %v667 = vadd.f32 %v651, %v447
        %v668 = vadd.f32 %v652, %v448
        %v669 = vadd.f32 %v653, %v449
        %v670 = vadd.f32 %v654, %v450
        %v671 = vadd.f32 %v655, %v451
        %v672 = vadd.f32 %v656, %v452
        %v673 = vadd.f32 %v657, %v453
        %v674 = vadd.f32 %v658, %v454
        %v675 = vadd.f32 %v659, %v455
        %v676 = vadd.f32 %v660, %v456
        %v677 = vadd.f32 %v661, %v457
        %v678 = vadd.f32 %v662, %v458
        %v679 = vadd.f32 %v663, %v459
        %v680 = vld [vmem:[%s3] sm:$0xff]
        %v681 = vld [vmem:[%s3 + $0x8] sm:$0xff]
        %v682 = vld [vmem:[%s3 + $0x10] sm:$0xff]
        %v683 = vld [vmem:[%s3 + $0x18] sm:$0xff]
        %v684 = vld [vmem:[%s3 + $0x20] sm:$0xff]
        %v685 = vld [vmem:[%s3 + $0x28] sm:$0xff]
        %v686 = vld [vmem:[%s3 + $0x30] sm:$0xff]
        %v687 = vld [vmem:[%s3 + $0x38] sm:$0xff]
        %v688 = vld [vmem:[%s3 + $0x40] sm:$0xff]
        %v689 = vld [vmem:[%s3 + $0x48] sm:$0xff]
        %v690 = vld [vmem:[%s3 + $0x50] sm:$0xff]
        %v691 = vld [vmem:[%s3 + $0x58] sm:$0xff]
        %v692 = vld [vmem:[%s3 + $0x60] sm:$0xff]
        %v693 = vld [vmem:[%s3 + $0x68] sm:$0xff]
        %v694 = vld [vmem:[%s3 + $0x70] sm:$0xff]
        %v695 = vld [vmem:[%s3 + $0x78] sm:$0xff]
        %v696 = vld [vmem:[%s4] sm:$0x1]
        %v698 = vlaneseq
        %v699 = vshrl.u32 %v698, 7
        %v700 = vsub.s32 0, %v699
        %v701 = vrot.slane %v696, %v700
        %703 = vmatprep.subr.mxu0 0.0
        %704 = vmatpush1.msra.mxu0 %v680
        %705 = vmatprep.subr.mxu0 0.0
        %706 = vmatpush1.msra.mxu0 %v681
        %707 = vmatprep.subr.mxu0 0.0
        %708 = vmatpush1.msra.mxu0 %v682
        %709 = vmatprep.subr.mxu0 0.0
        %710 = vmatpush1.msra.mxu0 %v683
        %711 = vmatprep.subr.mxu0 0.0
        %712 = vmatpush1.msra.mxu0 %v684
        %713 = vmatprep.subr.mxu0 0.0
        %714 = vmatpush1.msra.mxu0 %v685
        %715 = vmatprep.subr.mxu0 0.0
        %716 = vmatpush1.msra.mxu0 %v686
        %717 = vmatprep.subr.mxu0 0.0
        %718 = vmatpush1.msra.mxu0 %v687
        %719 = vmatprep.subr.mxu0 0.0
        %720 = vmatpush1.msra.mxu0 %v688
        %721 = vmatprep.subr.mxu0 0.0
        %722 = vmatpush1.msra.mxu0 %v689
        %723 = vmatprep.subr.mxu0 0.0
        %724 = vmatpush1.msra.mxu0 %v690
        %725 = vmatprep.subr.mxu0 0.0
        %726 = vmatpush1.msra.mxu0 %v691
        %727 = vmatprep.subr.mxu0 0.0
        %728 = vmatpush1.msra.mxu0 %v692
        %729 = vmatprep.subr.mxu0 0.0
        %730 = vmatpush1.msra.mxu0 %v693
        %731 = vmatprep.subr.mxu0 0.0
        %732 = vmatpush1.msra.mxu0 %v694
        %733 = vmatprep.subr.mxu0 0.0
        %734 = vmatpush1.msra.mxu0 %v695
        %735 = vmatprep.subr.mxu0 0.0
        %736 = vmatpush1.msra.mxu0 0.0
        %737 = vmatprep.subr.mxu0 0.0
        %738 = vmatpush1.msra.mxu0 0.0
        %739 = vmatprep.subr.mxu0 0.0
        %740 = vmatpush1.msra.mxu0 0.0
        %741 = vmatprep.subr.mxu0 0.0
        %742 = vmatpush1.msra.mxu0 0.0
        %743 = vmatprep.subr.mxu0 0.0
        %744 = vmatpush1.msra.mxu0 0.0
        %745 = vmatprep.subr.mxu0 0.0
        %746 = vmatpush1.msra.mxu0 0.0
        %747 = vmatprep.subr.mxu0 0.0
        %748 = vmatpush1.msra.mxu0 0.0
        %749 = vmatprep.subr.mxu0 0.0
        %750 = vmatpush1.msra.mxu0 0.0
        %751 = vmatprep.subr.mxu0 0.0
        %752 = vmatpush1.msra.mxu0 0.0
        %753 = vmatprep.subr.mxu0 0.0
        %754 = vmatpush1.msra.mxu0 0.0
        %755 = vmatprep.subr.mxu0 0.0
        %756 = vmatpush1.msra.mxu0 0.0
        %757 = vmatprep.subr.mxu0 0.0
        %758 = vmatpush1.msra.mxu0 0.0
        %759 = vmatprep.subr.mxu0 0.0
        %760 = vmatpush1.msra.mxu0 0.0
        %761 = vmatprep.subr.mxu0 0.0
        %762 = vmatpush1.msra.mxu0 0.0
        %763 = vmatprep.subr.mxu0 0.0
        %764 = vmatpush1.msra.mxu0 0.0
        %765 = vmatprep.subr.mxu0 0.0
        %766 = vmatpush1.msra.mxu0 0.0
        %767 = vmatprep.mubr.f32.mxu0 0.0
        %768 = vmatmul.mubr.f32.gmra.mrb[0].mxu0 %v664
        %v769 = vpop.f32.mrb[0].mxu0
        %v770 = vadd.f32 %v701, %v769
        %v771 = vpop.f32.mrb[0].mxu0
        %772 = vmatprep.mubr.f32.mxu0 0.0
        %773 = vmatmul.mubr.f32.gmra.mrb[0].mxu0 %v665
        %v774 = vpop.f32.mrb[0].mxu0
        %v775 = vadd.f32 %v701, %v774
        %v776 = vpop.f32.mrb[0].mxu0
        %777 = vmatprep.mubr.f32.mxu0 0.0
        %778 = vmatmul.mubr.f32.gmra.mrb[0].mxu0 %v666
        %v779 = vpop.f32.mrb[0].mxu0
        %v780 = vadd.f32 %v701, %v779
        %v781 = vpop.f32.mrb[0].mxu0
        %782 = vmatprep.mubr.f32.mxu0 0.0
        %783 = vmatmul.mubr.f32.gmra.mrb[0].mxu0 %v667
        %v784 = vpop.f32.mrb[0].mxu0
        %v785 = vadd.f32 %v701, %v784
        %v786 = vpop.f32.mrb[0].mxu0
        %787 = vmatprep.mubr.f32.mxu0 0.0
        %788 = vmatmul.mubr.f32.gmra.mrb[0].mxu0 %v668
        %v789 = vpop.f32.mrb[0].mxu0
        %v790 = vadd.f32 %v701, %v789
        %v791 = vpop.f32.mrb[0].mxu0
        %792 = vmatprep.mubr.f32.mxu0 0.0
        %793 = vmatmul.mubr.f32.gmra.mrb[0].mxu0 %v669
        %v794 = vpop.f32.mrb[0].mxu0
        %v795 = vadd.f32 %v701, %v794
        %v796 = vpop.f32.mrb[0].mxu0
        %797 = vmatprep.mubr.f32.mxu0 0.0
        %798 = vmatmul.mubr.f32.gmra.mrb[0].mxu0 %v670
        %v799 = vpop.f32.mrb[0].mxu0
        %v800 = vadd.f32 %v701, %v799
        %v801 = vpop.f32.mrb[0].mxu0
        %802 = vmatprep.mubr.f32.mxu0 0.0
        %803 = vmatmul.mubr.f32.gmra.mrb[0].mxu0 %v671
        %v804 = vpop.f32.mrb[0].mxu0
        %v805 = vadd.f32 %v701, %v804
        %v806 = vpop.f32.mrb[0].mxu0
        %807 = vmatprep.mubr.f32.mxu0 0.0
        %808 = vmatmul.mubr.f32.gmra.mrb[0].mxu0 %v672
        %v809 = vpop.f32.mrb[0].mxu0
        %v810 = vadd.f32 %v701, %v809
        %v811 = vpop.f32.mrb[0].mxu0
        %812 = vmatprep.mubr.f32.mxu0 0.0
        %813 = vmatmul.mubr.f32.gmra.mrb[0].mxu0 %v673
        %v814 = vpop.f32.mrb[0].mxu0
        %v815 = vadd.f32 %v701, %v814
        %v816 = vpop.f32.mrb[0].mxu0
        %817 = vmatprep.mubr.f32.mxu0 0.0
        %818 = vmatmul.mubr.f32.gmra.mrb[0].mxu0 %v674
        %v819 = vpop.f32.mrb[0].mxu0
        %v820 = vadd.f32 %v701, %v819
        %v821 = vpop.f32.mrb[0].mxu0
        %822 = vmatprep.mubr.f32.mxu0 0.0
        %823 = vmatmul.mubr.f32.gmra.mrb[0].mxu0 %v675
        %v824 = vpop.f32.mrb[0].mxu0
        %v825 = vadd.f32 %v701, %v824
        %v826 = vpop.f32.mrb[0].mxu0
        %827 = vmatprep.mubr.f32.mxu0 0.0
        %828 = vmatmul.mubr.f32.gmra.mrb[0].mxu0 %v676
        %v829 = vpop.f32.mrb[0].mxu0
        %v830 = vadd.f32 %v701, %v829
        %v831 = vpop.f32.mrb[0].mxu0
        %832 = vmatprep.mubr.f32.mxu0 0.0
        %833 = vmatmul.mubr.f32.gmra.mrb[0].mxu0 %v677
        %v834 = vpop.f32.mrb[0].mxu0
        %v835 = vadd.f32 %v701, %v834
        %v836 = vpop.f32.mrb[0].mxu0
        %837 = vmatprep.mubr.f32.mxu0 0.0
        %838 = vmatmul.mubr.f32.gmra.mrb[0].mxu0 %v678
        %v839 = vpop.f32.mrb[0].mxu0
        %v840 = vadd.f32 %v701, %v839
        %v841 = vpop.f32.mrb[0].mxu0
        %842 = vmatprep.mubr.f32.mxu0 0.0
        %843 = vmatmul.mubr.f32.gmra.mrb[0].mxu0 %v679
        %v844 = vpop.f32.mrb[0].mxu0
        %v845 = vadd.f32 %v701, %v844
        %v846 = vpop.f32.mrb[0].mxu0
        %847 = vdwg.mxu0
        %vm848 = vcmask 31744
        %849 = vst.msk [vmem:[%s260] sm:$0xff] %vm848, %v770
        %850 = vst.msk [vmem:[%s260 + $0x8] sm:$0xff] %vm848, %v775
        %851 = vst.msk [vmem:[%s260 + $0x10] sm:$0xff] %vm848, %v780
        %852 = vst.msk [vmem:[%s260 + $0x18] sm:$0xff] %vm848, %v785
        %853 = vst.msk [vmem:[%s260 + $0x20] sm:$0xff] %vm848, %v790
        %854 = vst.msk [vmem:[%s260 + $0x28] sm:$0xff] %vm848, %v795
        %855 = vst.msk [vmem:[%s260 + $0x30] sm:$0xff] %vm848, %v800
        %856 = vst.msk [vmem:[%s260 + $0x38] sm:$0xff] %vm848, %v805
        %857 = vst.msk [vmem:[%s260 + $0x40] sm:$0xff] %vm848, %v810
        %858 = vst.msk [vmem:[%s260 + $0x48] sm:$0xff] %vm848, %v815
        %859 = vst.msk [vmem:[%s260 + $0x50] sm:$0xff] %vm848, %v820
        %860 = vst.msk [vmem:[%s260 + $0x58] sm:$0xff] %vm848, %v825
        %861 = vst.msk [vmem:[%s260 + $0x60] sm:$0xff] %vm848, %v830
        %862 = vst.msk [vmem:[%s260 + $0x68] sm:$0xff] %vm848, %v835
        %863 = vst.msk [vmem:[%s260 + $0x70] sm:$0xff] %vm848, %v840
        %864 = vst.msk [vmem:[%s260 + $0x78] sm:$0xff] %vm848, %v845
        %s865 = smul.u32 16, %s20
        %p866 = scmp.lt.s32.totalorder %s865, 63
        %s867 = scalar_select %p866, %s865, 63
        %s868 = smul.addr %s867, 8
        %s869 = scalar_lea.vmem %s5, %s868
        // Predicated region
        $region49: #{tpu_custom_call.1} parent=39 // pred_check
          %p870 = pneg %p148
        $region50: #{tpu_custom_call.1} parent=39 // pred_check_branch
          %872 = sbr.rel (%p870) target = $region52
        $region51: #{tpu_custom_call.1} parent=39 // pred_region
          %s873 = smul.u32 16, %s20
        $region52: #{tpu_custom_call.1} parent=39 // pred_fallthru
          _
      $region40: #{tpu_custom_call.1} parent=5 // pred_fallthru
        _
      %p874 = scmp.le.s32.totalorder 2, %s15
      // Predicated region
      $region53: #{tpu_custom_call.1} parent=5 // pred_check
        %p875 = pneg %p874
      $region54: #{tpu_custom_call.1} parent=5 // pred_check_branch
        %877 = sbr.rel (%p875) target = $region56
      $region55: #{tpu_custom_call.1} parent=5 // pred_region
        %s878 = ssub.s32 %s15, 2
        // Predicated region
        $region57: #{tpu_custom_call.1} parent=55 // pred_check
          %p879 = pneg %p154
        $region58: #{tpu_custom_call.1} parent=55 // pred_check_branch
          %881 = sbr.rel (%p879) target = $region60
        $region59: #{tpu_custom_call.1} parent=55 // pred_region
          %s882 = smul.u32 16, %s21
          %p883 = scmp.lt.s32.totalorder %s882, 63
          %s884 = scalar_select %p883, %s882, 63
          %s885 = smul.addr %s884, 8
          %s886 = scalar_lea.vmem %s5, %s885
        $region60: #{tpu_custom_call.1} parent=55 // pred_fallthru
          _
      $region56: #{tpu_custom_call.1} parent=5 // pred_fallthru
        _
    $region6: #{tpu_custom_call.1} parent=1 // loop_footer
      %s19 = sadd.s32 1, %s15
    $region7: #{tpu_custom_call.1} parent=1 // loop_footer_branch
      %14 = sbr.rel target = $region3
    $region8: #{tpu_custom_call.1} parent=1 // loop_exit
      _
    %887 = vsyncpa [#allocation3], 1
    %s888 = scalar_lea.sflag [#allocation3], 1
    %889 = vsyncpa %s888, 1
    %890 = vsyncpa [#allocation5], 1

</llo_original>
